<compile_context>
chip_gen: v7x
topology: tpu7x:2x2x1
jax: 0.10.0
libtpu: 0.0.40
codegen_flags: <defaults>
</compile_context>

<pallas_src>
import math

import jax
import jax.numpy as jnp
from jax import lax
from jax.experimental import pallas as pl
from jax.experimental.pallas import tpu as pltpu


def _round_up(x, m):
    return ((x + m - 1) // m) * m


def _cdiv(a, b):
    return -(-a // b)


# ---------------------------------------------------------------------------
# Kernels
# ---------------------------------------------------------------------------
def _stage1_kernel(x_ref, w1_ref, gamma_ref, beta_ref, wf_ref, bf_ref, f_ref):
    """fc1 -> BatchNorm1d (batch stats, fused scale/shift) -> tanh -> features."""
    # fc1 (bias dropped: exactly cancelled by the BN batch-mean subtraction).
    h = jnp.dot(x_ref[...], w1_ref[...],
                preferred_element_type=jnp.float32)                  # [B, H] f32

    # BatchNorm1d (training mode, biased variance, eps=1e-5) fused to scale/shift.
    mean = jnp.mean(h, axis=0, keepdims=True)                        # [1, H]
    var = jnp.mean((h - mean) * (h - mean), axis=0, keepdims=True)   # [1, H]
    scale = gamma_ref[...] * lax.rsqrt(var + 1e-5)                   # [1, H]
    shift = beta_ref[...] - mean * scale                             # [1, H]
    h = jnp.tanh(h * scale + shift)                                  # [B, H] f32

    # features: h @ Wf + bf  (padded columns are exactly zero)
    f = jnp.dot(h.astype(jnp.bfloat16), wf_ref[...],
                preferred_element_type=jnp.float32) + bf_ref[...]    # [B, F_pad]
    f_ref[...] = f.astype(f_ref.dtype)                               # bf16 out


def _classify_kernel(f_ref, wc_ref, o_ref):
    """One column tile of classify: f @ Wc_tile (bias-free Linear)."""
    o_ref[...] = jnp.dot(f_ref[...], wc_ref[...],
                         preferred_element_type=jnp.float32)


# ---------------------------------------------------------------------------
# Tiling choice for the classify weight stream
# ---------------------------------------------------------------------------
_STEP_OVERHEAD_BYTES = 512 * 1024       # ~0.35 us of HBM bandwidth per grid step
_TILE_VMEM_BUDGET = 24 * 1024 * 1024    # budget for the double-buffered wc tile


def _choose_c_tiling(C, F_pad):
    """Pick (tile_cols, C_pad).

    Pads C to a multiple of 256 decoupled from the tile size, trading padded
    weight bytes against per-grid-step overhead; mildly prefers >= 2 tiles so
    the "parallel" axis can shard across both v7x TensorCores.
    """
    max_tiles = max(2, _cdiv(C, 256))
    best = None
    for n in range(1, max_tiles + 1):
        tn = _round_up(_cdiv(C, n), 256)
        n_eff = _cdiv(C, tn)
        c_pad = n_eff * tn
        if 2 * F_pad * tn * 2 > _TILE_VMEM_BUDGET:   # double-buffered bf16 tile
            continue
        cost = c_pad * F_pad * 2 + n_eff * _STEP_OVERHEAD_BYTES
        if n_eff == 1:
            cost += 2 * _STEP_OVERHEAD_BYTES          # bias toward >= 2 tiles
        if best is None or cost < best[0]:
            best = (cost, tn, c_pad)
    if best is None:                                   # fall back to small tiles
        return 256, _round_up(C, 256)
    _, tn, c_pad = best
    return tn, c_pad


# ---------------------------------------------------------------------------
# One-time parameter preparation (hoisted out of the per-call path)
# ---------------------------------------------------------------------------
def prepare_params(params):
    """Pad / cast weights once. `params` weights are f32, stored as [in, out]."""
    w1, b1, gamma, beta, wf, bf, wc = params
    del b1  # exactly cancelled by BN batch-mean subtraction (see kernel comment)

    IN, H = w1.shape
    F = wf.shape[1]
    C = wc.shape[1]
    F_pad = _round_up(F, 128)
    tn, C_pad = _choose_c_tiling(C, F_pad)

    w1b = w1.astype(jnp.bfloat16)                                       # [IN, H]
    wfb = jnp.zeros((H, F_pad), jnp.bfloat16).at[:, :F].set(
        wf.astype(jnp.bfloat16))                                        # [H, F_pad]
    bfb = jnp.zeros((1, F_pad), jnp.float32).at[:, :F].set(
        bf.reshape(1, F))                                               # [1, F_pad]
    wcb = jnp.zeros((F_pad, C_pad), jnp.bfloat16).at[:F, :C].set(
        wc.astype(jnp.bfloat16))                                        # [F_pad, C_pad]
    gamma2 = gamma.reshape(1, H).astype(jnp.float32)
    beta2 = beta.reshape(1, H).astype(jnp.float32)

    arrays = (w1b, gamma2, beta2, wfb, bfb, wcb)
    arrays = jax.block_until_ready(arrays)   # materialize once, outside hot path
    meta = dict(IN=IN, H=H, F=F, F_pad=F_pad, C=C, C_pad=C_pad, tn=tn)
    return arrays, meta


# ---------------------------------------------------------------------------
# Forward
# ---------------------------------------------------------------------------
def coconut_forward(pooled, prepped):
    arrays, meta = prepped
    w1b, gamma, beta, wfb, bfb, wcb = arrays
    IN, H = meta["IN"], meta["H"]
    F_pad, C, C_pad, tn = meta["F_pad"], meta["C"], meta["C_pad"], meta["tn"]

    B = pooled.shape[0]
    if pooled.shape[1] != IN:
        raise ValueError(f"pooled has {pooled.shape[1]} features, expected {IN}")
    if B > 1024:
        # BN batch statistics need the whole batch resident in one VMEM block.
        raise ValueError("batch too large for single-block BatchNorm statistics")

    x = pooled.astype(jnp.bfloat16)

    # ---- Stage 1: fc1 -> BN -> tanh -> features (runs once) ----------------
    f = pl.pallas_call(
        _stage1_kernel,
        out_shape=jax.ShapeDtypeStruct((B, F_pad), jnp.bfloat16),
        grid_spec=pltpu.PrefetchScalarGridSpec(
            num_scalar_prefetch=0,
            grid=(1,),
            in_specs=[
                pl.BlockSpec((B, IN), lambda i: (0, 0)),      # pooled (bf16)
                pl.BlockSpec((IN, H), lambda i: (0, 0)),      # fc1 W (bf16)
                pl.BlockSpec((1, H), lambda i: (0, 0)),       # bn gamma (f32)
                pl.BlockSpec((1, H), lambda i: (0, 0)),       # bn beta (f32)
                pl.BlockSpec((H, F_pad), lambda i: (0, 0)),   # features W (bf16)
                pl.BlockSpec((1, F_pad), lambda i: (0, 0)),   # features b (f32)
            ],
            out_specs=pl.BlockSpec((B, F_pad), lambda i: (0, 0)),
        ),
        compiler_params=pltpu.CompilerParams(
            dimension_semantics=("arbitrary",),
        ),
        cost_estimate=pl.CostEstimate(
            flops=2 * B * (IN * H + H * F_pad),
            transcendentals=B * H + H,
            bytes_accessed=(B * IN + IN * H + H * F_pad + B * F_pad) * 2
                           + (2 * H + F_pad) * 4,
        ),
    )(x, w1b, gamma, beta, wfb, bfb)

    # ---- Stage 2: classify — stream the big weight, 1-D "parallel" grid ----
    n_tiles = C_pad // tn
    out = pl.pallas_call(
        _classify_kernel,
        out_shape=jax.ShapeDtypeStruct((B, C_pad), jnp.float32),
        grid_spec=pltpu.PrefetchScalarGridSpec(
            num_scalar_prefetch=0,
            grid=(n_tiles,),
            in_specs=[
                pl.BlockSpec((B, F_pad), lambda j: (0, 0)),    # features (bf16)
                pl.BlockSpec((F_pad, tn), lambda j: (0, j)),   # classify W tile
            ],
            out_specs=pl.BlockSpec((B, tn), lambda j: (0, j)),
        ),
        compiler_params=pltpu.CompilerParams(
            dimension_semantics=("parallel",),      # shard C tiles on v7x 2-TC
            vmem_limit_bytes=32 * 1024 * 1024,
        ),
        cost_estimate=pl.CostEstimate(
            flops=2 * B * F_pad * C_pad,
            transcendentals=0,
            bytes_accessed=(B * F_pad + F_pad * C_pad) * 2 + B * C_pad * 4,
        ),
    )(f, wcb)

    return out[:, :C] if C_pad != C else out


# ---------------------------------------------------------------------------
# Deterministic parameter construction (xavier_uniform_ on Linear weights,
# PyTorch-default uniform bias init, BN gamma=1 / beta=0). Weights stored
# pre-transposed as [in, out] so y = x @ W + b matches PyTorch's x @ W.T + b.
# ---------------------------------------------------------------------------
def xavier_uniform(key, fan_out, fan_in):
    limit = math.sqrt(6.0 / (fan_in + fan_out))
    return jax.random.uniform(key, (fan_in, fan_out), jnp.float32, -limit, limit)


def make_params(key, input_size, hidden, feature_size, num_classes):
    k1, k2, k3, k4, k5 = jax.random.split(key, 5)
    w1 = xavier_uniform(k1, hidden, input_size)                     # [IN, H]
    b1 = jax.random.uniform(k2, (1, hidden), jnp.float32,
                            -1.0 / math.sqrt(input_size), 1.0 / math.sqrt(input_size))
    gamma = jnp.ones((1, hidden), jnp.float32)
    beta = jnp.zeros((1, hidden), jnp.float32)
    wf = xavier_uniform(k3, feature_size, hidden)                   # [H, F]
    bf = jax.random.uniform(k4, (1, feature_size), jnp.float32,
                            -1.0 / math.sqrt(hidden), 1.0 / math.sqrt(hidden))
    wc = xavier_uniform(k5, num_classes, feature_size)              # [F, C]
    return (w1, b1, gamma, beta, wf, bf, wc)


def reference_forward(pooled, params):
    """PyTorch-order reference with the same bf16 weight quantization. It keeps
    the fc1 bias and the unfused BN, verifying both the in-kernel bias
    cancellation and the fused BN scale/shift."""
    w1, b1, gamma, beta, wf, bf, wc = params
    bf16 = jnp.bfloat16
    h = jnp.dot(pooled.astype(bf16), w1.astype(bf16),
                preferred_element_type=jnp.float32) + b1
    mean = jnp.mean(h, axis=0, keepdims=True)
    var = jnp.mean((h - mean) ** 2, axis=0, keepdims=True)
    h = (h - mean) * lax.rsqrt(var + 1e-5)
    h = h * gamma + beta
    h = jnp.tanh(h)
    f = jnp.dot(h.astype(bf16), wf.astype(bf16),
                preferred_element_type=jnp.float32) + bf
    return jnp.dot(f.astype(bf16), wc.astype(bf16),
                   preferred_element_type=jnp.float32)


if __name__ == "__main__":
    # Small shapes consistent with the module (defaults 768/192/9292 scaled
    # down; the fc1 / BatchNorm1d width of 256 is hardwired in the module).
    B = 8                # batch
    INPUT_SIZE = 128     # module default 768, scaled down
    HIDDEN = 256         # hardwired fc1 / BatchNorm1d width
    FEATURE_SIZE = 64    # module default 192, scaled down
    NUM_CLASSES = 512    # module default 9292, scaled down

    key = jax.random.PRNGKey(0)
    kx, kp = jax.random.split(key)

    # forward() unpacks (last_hidden_state, pooled_output, hidden_states,
    # attentions) and only uses pooled_output; mirror that interface.
    last_hidden_state = jax.random.normal(kx, (B, 4, INPUT_SIZE), jnp.float32)
    pooled_output = jax.random.normal(jax.random.fold_in(kx, 1),
                                      (B, INPUT_SIZE), jnp.float32)
    input_tensor = (last_hidden_state, pooled_output, None, None)

    params = make_params(kp, INPUT_SIZE, HIDDEN, FEATURE_SIZE, NUM_CLASSES)

    # One-time weight prep (pad + bf16 cast), hoisted out of the per-call path.
    prepped = prepare_params(params)

    _, pooled, _, _ = input_tensor
    out = coconut_forward(pooled, prepped)   # 2-tile classify grid at these sizes
    out = jax.block_until_ready(out)

    ref = reference_forward(pooled, params)
    assert out.shape == (B, NUM_CLASSES), out.shape
    max_err = float(jnp.max(jnp.abs(out - ref)))
    assert jnp.allclose(out, ref, atol=1e-2, rtol=1e-2), \
        f"mismatch vs reference (max abs err {max_err})"

    print("KERNEL_OK")
</pallas_src>

<mosaic_0001>
module attributes {stable_mosaic.version = 11 : i64} {
  func.func @_stage1_kernel(%arg0: i32, %arg1: memref<8x128xbf16, #tpu.memory_space<vmem>>, %arg2: memref<128x256xbf16, #tpu.memory_space<vmem>>, %arg3: memref<1x256xf32, #tpu.memory_space<vmem>>, %arg4: memref<1x256xf32, #tpu.memory_space<vmem>>, %arg5: memref<256x128xbf16, #tpu.memory_space<vmem>>, %arg6: memref<1x128xf32, #tpu.memory_space<vmem>>, %arg7: memref<8x128xbf16, #tpu.memory_space<vmem>>) attributes {dimension_semantics = [#tpu.dimension_semantics<arbitrary>], iteration_bounds = array<i64: 1>, scalar_prefetch = 0 : i64, scratch_operands = 0 : i64, tpu.core_type = #tpu.core_type<tc>, window_params = [{pipeline_mode = #tpu.pipeline_mode<synchronous>, transform_indices = @transform_0, window_bounds = array<i64: 8, 128>}, {pipeline_mode = #tpu.pipeline_mode<synchronous>, transform_indices = @transform_1, window_bounds = array<i64: 128, 256>}, {pipeline_mode = #tpu.pipeline_mode<synchronous>, transform_indices = @transform_2, window_bounds = array<i64: 1, 256>}, {pipeline_mode = #tpu.pipeline_mode<synchronous>, transform_indices = @transform_3, window_bounds = array<i64: 1, 256>}, {pipeline_mode = #tpu.pipeline_mode<synchronous>, transform_indices = @transform_4, window_bounds = array<i64: 256, 128>}, {pipeline_mode = #tpu.pipeline_mode<synchronous>, transform_indices = @transform_5, window_bounds = array<i64: 1, 128>}, {pipeline_mode = #tpu.pipeline_mode<synchronous>, transform_indices = @transform_6, window_bounds = array<i64: 8, 128>}]} {
    %c0 = arith.constant 0 : index
    %c0_0 = arith.constant 0 : index
    %0 = vector.load %arg1[%c0, %c0_0] : memref<8x128xbf16, #tpu.memory_space<vmem>>, vector<8x128xbf16>
    %c0_1 = arith.constant 0 : index
    %c0_2 = arith.constant 0 : index
    %1 = vector.load %arg2[%c0_1, %c0_2] : memref<128x256xbf16, #tpu.memory_space<vmem>>, vector<128x256xbf16>
    %cst = arith.constant dense<0.000000e+00> : vector<8x256xf32>
    %2 = tpu.matmul %0, %1, %cst {dimension_numbers = #tpu.dot_dimension_numbers<[1], [0], [0], [1], [0, 0, 1, 1], [], []>} : vector<8x128xbf16>, vector<128x256xbf16>, vector<8x256xf32> -> vector<8x256xf32>
    %cst_3 = arith.constant dense<0.000000e+00> : vector<256xf32>
    %3 = vector.multi_reduction <add>, %2, %cst_3 [0] : vector<8x256xf32> to vector<256xf32>
    %4 = vector.shape_cast %3 : vector<256xf32> to vector<1x256xf32>
    %cst_4 = arith.constant 8.000000e+00 : f32
    %5 = vector.broadcast %cst_4 : f32 to vector<1x256xf32>
    %6 = arith.divf %4, %5 : vector<1x256xf32>
    %7 = vector.broadcast %6 : vector<1x256xf32> to vector<8x256xf32>
    %8 = arith.subf %2, %7 : vector<8x256xf32>
    %9 = vector.broadcast %6 : vector<1x256xf32> to vector<8x256xf32>
    %10 = arith.subf %2, %9 : vector<8x256xf32>
    %11 = arith.mulf %8, %10 : vector<8x256xf32>
    %cst_5 = arith.constant dense<0.000000e+00> : vector<256xf32>
    %12 = vector.multi_reduction <add>, %11, %cst_5 [0] : vector<8x256xf32> to vector<256xf32>
    %13 = vector.shape_cast %12 : vector<256xf32> to vector<1x256xf32>
    %cst_6 = arith.constant 8.000000e+00 : f32
    %14 = vector.broadcast %cst_6 : f32 to vector<1x256xf32>
    %15 = arith.divf %13, %14 : vector<1x256xf32>
    %c0_7 = arith.constant 0 : index
    %c0_8 = arith.constant 0 : index
    %16 = vector.load %arg3[%c0_7, %c0_8] : memref<1x256xf32, #tpu.memory_space<vmem>>, vector<1x256xf32>
    %cst_9 = arith.constant 9.99999974E-6 : f32
    %17 = vector.broadcast %cst_9 : f32 to vector<1x256xf32>
    %18 = arith.addf %15, %17 : vector<1x256xf32>
    %19 = math.rsqrt %18 : vector<1x256xf32>
    %20 = arith.mulf %16, %19 : vector<1x256xf32>
    %c0_10 = arith.constant 0 : index
    %c0_11 = arith.constant 0 : index
    %21 = vector.load %arg4[%c0_10, %c0_11] : memref<1x256xf32, #tpu.memory_space<vmem>>, vector<1x256xf32>
    %22 = arith.mulf %6, %20 : vector<1x256xf32>
    %23 = arith.subf %21, %22 : vector<1x256xf32>
    %24 = vector.broadcast %20 : vector<1x256xf32> to vector<8x256xf32>
    %25 = arith.mulf %2, %24 : vector<8x256xf32>
    %26 = vector.broadcast %23 : vector<1x256xf32> to vector<8x256xf32>
    %27 = arith.addf %25, %26 : vector<8x256xf32>
    %28 = math.tanh %27 : vector<8x256xf32>
    %29 = arith.truncf %28 : vector<8x256xf32> to vector<8x256xbf16>
    %c0_12 = arith.constant 0 : index
    %c0_13 = arith.constant 0 : index
    %30 = vector.load %arg5[%c0_12, %c0_13] : memref<256x128xbf16, #tpu.memory_space<vmem>>, vector<256x128xbf16>
    %cst_14 = arith.constant dense<0.000000e+00> : vector<8x128xf32>
    %31 = tpu.matmul %29, %30, %cst_14 {dimension_numbers = #tpu.dot_dimension_numbers<[1], [0], [0], [1], [0, 0, 1, 1], [], []>} : vector<8x256xbf16>, vector<256x128xbf16>, vector<8x128xf32> -> vector<8x128xf32>
    %c0_15 = arith.constant 0 : index
    %c0_16 = arith.constant 0 : index
    %32 = vector.load %arg6[%c0_15, %c0_16] : memref<1x128xf32, #tpu.memory_space<vmem>>, vector<1x128xf32>
    %33 = vector.broadcast %32 : vector<1x128xf32> to vector<8x128xf32>
    %34 = arith.addf %31, %33 : vector<8x128xf32>
    %35 = arith.truncf %34 : vector<8x128xf32> to vector<8x128xbf16>
    %c0_17 = arith.constant 0 : index
    %c0_18 = arith.constant 0 : index
    %36 = vector.load %arg7[%c0_17, %c0_18] : memref<8x128xbf16, #tpu.memory_space<vmem>>, vector<8x128xbf16>
    tpu.vector_store %arg7[%c0_17, %c0_18], %35 {strides = array<i32>} : memref<8x128xbf16, #tpu.memory_space<vmem>>, vector<8x128xbf16>,
    return
  }
  func.func @transform_0(%arg0: i32) -> (i32, i32) {
    %c0_i32 = arith.constant 0 : i32
    %c0_i32_0 = arith.constant 0 : i32
    %c0_i32_1 = arith.constant 0 : i32
    return %c0_i32, %c0_i32_0 : i32, i32
  }
  func.func @transform_1(%arg0: i32) -> (i32, i32) {
    %c0_i32 = arith.constant 0 : i32
    %c0_i32_0 = arith.constant 0 : i32
    %c0_i32_1 = arith.constant 0 : i32
    return %c0_i32, %c0_i32_0 : i32, i32
  }
  func.func @transform_2(%arg0: i32) -> (i32, i32) {
    %c0_i32 = arith.constant 0 : i32
    %c0_i32_0 = arith.constant 0 : i32
    %c0_i32_1 = arith.constant 0 : i32
    return %c0_i32, %c0_i32_0 : i32, i32
  }
  func.func @transform_3(%arg0: i32) -> (i32, i32) {
    %c0_i32 = arith.constant 0 : i32
    %c0_i32_0 = arith.constant 0 : i32
    %c0_i32_1 = arith.constant 0 : i32
    return %c0_i32, %c0_i32_0 : i32, i32
  }
  func.func @transform_4(%arg0: i32) -> (i32, i32) {
    %c0_i32 = arith.constant 0 : i32
    %c0_i32_0 = arith.constant 0 : i32
    %c0_i32_1 = arith.constant 0 : i32
    return %c0_i32, %c0_i32_0 : i32, i32
  }
  func.func @transform_5(%arg0: i32) -> (i32, i32) {
    %c0_i32 = arith.constant 0 : i32
    %c0_i32_0 = arith.constant 0 : i32
    %c0_i32_1 = arith.constant 0 : i32
    return %c0_i32, %c0_i32_0 : i32, i32
  }
  func.func @transform_6(%arg0: i32) -> (i32, i32) {
    %c0_i32 = arith.constant 0 : i32
    %c0_i32_0 = arith.constant 0 : i32
    %c0_i32_1 = arith.constant 0 : i32
    return %c0_i32, %c0_i32_0 : i32, i32
  }
}

</mosaic_0001>

<llo_original>
// kernel: tpu_custom_call.1
$region0: #{tpu_custom_call.1}
  #allocation0 [shape = 'u32[]', space=smem, size = 0x4, offset = 0x4, fixed_abs, tag = 'smem constant byte address 0x4 - core index']
  #allocation1 [shape = 'u32[144,128]{1,0:T(1,128)}', space=vmem, size = 0x12000, scoped, tag = 'internal scratch']
  %s0 = inlined_call_operand.hbm [shape: bf16[8,128], index: 0, kind: input, shape index: {}]
  %s1 = inlined_call_operand.hbm [shape: bf16[128,256], index: 1, kind: input, shape index: {}]
  %s2 = inlined_call_operand.vmem [shape: f32[1,256], index: 2, kind: input, shape index: {}]
  %s3 = inlined_call_operand.vmem [shape: f32[1,256], index: 3, kind: input, shape index: {}]
  %s4 = inlined_call_operand.hbm [shape: bf16[256,128], index: 4, kind: input, shape index: {}]
  %s5 = inlined_call_operand.vmem [shape: f32[1,128], index: 5, kind: input, shape index: {}]
  %s6 = inlined_call_operand.hbm [shape: bf16[8,128], index: 6, kind: output, shape index: {}]
  %s7 = sld [smem:[#allocation0]]
  $region46: #{tpu_custom_call.1} parent=0
    _
  %s9 = ssub.s32 1, %s7
  %s10 = scalar_select 0, %s9, %s7
  $region1: #{tpu_custom_call.1} parent=0
    #allocation2 [shape = 'u8[2048]{0}', space=vmem, size = 0x800, scoped, tag = 'input window, operand 0, single buffered']
    #allocation3 [shape = 's32[1]{0}', space=sflag, size = 0x4, scoped, tag = 'scoped memory for tpu_custom_call.1']
    #allocation4 [shape = 's32[1]{0}', space=sflag, size = 0x4, scoped, tag = 'scoped memory for tpu_custom_call.1']
    #allocation5 [shape = 'u8[65536]{0}', space=vmem, size = 0x10000, scoped, tag = 'input window, operand 1, single buffered']
    #allocation6 [shape = 's32[1]{0}', space=sflag, size = 0x4, scoped, tag = 'scoped memory for tpu_custom_call.1']
    #allocation7 [shape = 'u8[65536]{0}', space=vmem, size = 0x10000, scoped, tag = 'input window, operand 4, single buffered']
    #allocation8 [shape = 'u8[2048]{0}', space=vmem, size = 0x800, scoped, tag = 'output window, operand 0, single buffered']
    %11 = vsyncpa [#allocation3], 0
    %12 = vsyncpa [#allocation6], 0
    %13 = vsyncpa [#allocation4], 0
    // Predicated region
    $region2: #{tpu_custom_call.1} parent=1 // pred_check
      _
    $region3: #{tpu_custom_call.1} parent=1 // pred_check_branch
      %15 = sbr.rel (0) target = $region5
    $region4: #{tpu_custom_call.1} parent=1 // pred_region
      %s17 = ssub.s32 64, 64
      %18 = vsyncadd [#allocation3], %s17
      %s20 = sshll.u32 [#allocation2], 4
      %s21 = int_to_ptr.vmem [resolvable:$true] %s20
      %23 = dma.hbm_to_vmem [thread:$0]  %s0, 64, %s21, [#allocation3]
    $region5: #{tpu_custom_call.1} parent=1 // pred_fallthru
      _
    // Predicated region
    $region6: #{tpu_custom_call.1} parent=1 // pred_check
      _
    $region7: #{tpu_custom_call.1} parent=1 // pred_check_branch
      %25 = sbr.rel (0) target = $region9
    $region8: #{tpu_custom_call.1} parent=1 // pred_region
      %s27 = ssub.s32 2048, 2048
      %28 = vsyncadd [#allocation6], %s27
      %s29 = sshll.u32 [#allocation5], 4
      %s30 = int_to_ptr.vmem [resolvable:$true] %s29
      %35 = dma.hbm_to_vmem [thread:$0]  %s1, 2048, %s30, [#allocation6], 128, 128, 8
    $region9: #{tpu_custom_call.1} parent=1 // pred_fallthru
      _
    // Predicated region
    $region10: #{tpu_custom_call.1} parent=1 // pred_check
      _
    $region11: #{tpu_custom_call.1} parent=1 // pred_check_branch
      %37 = sbr.rel (0) target = $region13
    $region12: #{tpu_custom_call.1} parent=1 // pred_region
      _
    $region13: #{tpu_custom_call.1} parent=1 // pred_fallthru
      _
    // Predicated region
    $region14: #{tpu_custom_call.1} parent=1 // pred_check
      _
    $region15: #{tpu_custom_call.1} parent=1 // pred_check_branch
      %39 = sbr.rel (0) target = $region17
    $region16: #{tpu_custom_call.1} parent=1 // pred_region
      _
    $region17: #{tpu_custom_call.1} parent=1 // pred_fallthru
      _
    // Predicated region
    $region18: #{tpu_custom_call.1} parent=1 // pred_check
      _
    $region19: #{tpu_custom_call.1} parent=1 // pred_check_branch
      %41 = sbr.rel (0) target = $region21
    $region20: #{tpu_custom_call.1} parent=1 // pred_region
      %s43 = ssub.s32 2048, 2048
      %44 = vsyncadd [#allocation6], %s43
      %s45 = sshll.u32 [#allocation7], 4
      %s46 = int_to_ptr.vmem [resolvable:$true] %s45
      %51 = dma.hbm_to_vmem [thread:$0]  %s4, 2048, %s46, [#allocation6], 64, 64, 4
    $region21: #{tpu_custom_call.1} parent=1 // pred_fallthru
      _
    // Predicated region
    $region22: #{tpu_custom_call.1} parent=1 // pred_check
      _
    $region23: #{tpu_custom_call.1} parent=1 // pred_check_branch
      %53 = sbr.rel (0) target = $region25
    $region24: #{tpu_custom_call.1} parent=1 // pred_region
      _
    $region25: #{tpu_custom_call.1} parent=1 // pred_fallthru
      _
    // Predicated region
    $region26: #{tpu_custom_call.1} parent=1 // pred_check
      _
    $region27: #{tpu_custom_call.1} parent=1 // pred_check_branch
      %55 = sbr.rel (0) target = $region29
    $region28: #{tpu_custom_call.1} parent=1 // pred_region
      %56 = dma.done [#allocation3], 64
    $region29: #{tpu_custom_call.1} parent=1 // pred_fallthru
      _
    // Predicated region
    $region30: #{tpu_custom_call.1} parent=1 // pred_check
      _
    $region31: #{tpu_custom_call.1} parent=1 // pred_check_branch
      %58 = sbr.rel (0) target = $region33
    $region32: #{tpu_custom_call.1} parent=1 // pred_region
      %59 = dma.done [#allocation6], 2048
    $region33: #{tpu_custom_call.1} parent=1 // pred_fallthru
      _
    // Predicated region
    $region34: #{tpu_custom_call.1} parent=1 // pred_check
      _
    $region35: #{tpu_custom_call.1} parent=1 // pred_check_branch
      %61 = sbr.rel (0) target = $region37
    $region36: #{tpu_custom_call.1} parent=1 // pred_region
      %62 = dma.done [#allocation6], 2048
    $region37: #{tpu_custom_call.1} parent=1 // pred_fallthru
      _
    %v64 = vld [vmem:[#allocation2] sm:$0xf]
    %v65 = vld [vmem:[#allocation5] sm:$0xff]
    %v66 = vld [vmem:[#allocation5 + $0x8] sm:$0xff]
    %v67 = vld [vmem:[#allocation5 + $0x10] sm:$0xff]
    %v68 = vld [vmem:[#allocation5 + $0x18] sm:$0xff]
    %v69 = vld [vmem:[#allocation5 + $0x20] sm:$0xff]
    %v70 = vld [vmem:[#allocation5 + $0x28] sm:$0xff]
    %v71 = vld [vmem:[#allocation5 + $0x30] sm:$0xff]
    %v72 = vld [vmem:[#allocation5 + $0x38] sm:$0xff]
    %v73 = vld [vmem:[#allocation5 + $0x40] sm:$0xff]
    %v74 = vld [vmem:[#allocation5 + $0x48] sm:$0xff]
    %v75 = vld [vmem:[#allocation5 + $0x50] sm:$0xff]
    %v76 = vld [vmem:[#allocation5 + $0x58] sm:$0xff]
    %v77 = vld [vmem:[#allocation5 + $0x60] sm:$0xff]
    %v78 = vld [vmem:[#allocation5 + $0x68] sm:$0xff]
    %v79 = vld [vmem:[#allocation5 + $0x70] sm:$0xff]
    %v80 = vld [vmem:[#allocation5 + $0x78] sm:$0xff]
    %v97 = vunpack.c.l.b16 %v65
    %v98 = vunpack.c.h.b16 %v65
    %v99 = vunpack.c.l.b16 %v66
    %v100 = vunpack.c.h.b16 %v66
    %v101 = vunpack.c.l.b16 %v67
    %v102 = vunpack.c.h.b16 %v67
    %v103 = vunpack.c.l.b16 %v68
    %v104 = vunpack.c.h.b16 %v68
    %v105 = vunpack.c.l.b16 %v69
    %v106 = vunpack.c.h.b16 %v69
    %v107 = vunpack.c.l.b16 %v70
    %v108 = vunpack.c.h.b16 %v70
    %v109 = vunpack.c.l.b16 %v71
    %v110 = vunpack.c.h.b16 %v71
    %v111 = vunpack.c.l.b16 %v72
    %v112 = vunpack.c.h.b16 %v72
    %v113 = vunpack.c.l.b16 %v73
    %v114 = vunpack.c.h.b16 %v73
    %v115 = vunpack.c.l.b16 %v74
    %v116 = vunpack.c.h.b16 %v74
    %v117 = vunpack.c.l.b16 %v75
    %v118 = vunpack.c.h.b16 %v75
    %v119 = vunpack.c.l.b16 %v76
    %v120 = vunpack.c.h.b16 %v76
    %v121 = vunpack.c.l.b16 %v77
    %v122 = vunpack.c.h.b16 %v77
    %v123 = vunpack.c.l.b16 %v78
    %v124 = vunpack.c.h.b16 %v78
    %v125 = vunpack.c.l.b16 %v79
    %v126 = vunpack.c.h.b16 %v79
    %v127 = vunpack.c.l.b16 %v80
    %v128 = vunpack.c.h.b16 %v80
    %v129 = vpack.c.b16 %v99, %v97
    %v130 = vpack.c.b16 %v100, %v98
    %v131 = vpack.c.b16 %v103, %v101
    %v132 = vpack.c.b16 %v104, %v102
    %v133 = vpack.c.b16 %v107, %v105
    %v134 = vpack.c.b16 %v108, %v106
    %v135 = vpack.c.b16 %v111, %v109
    %v136 = vpack.c.b16 %v112, %v110
    %v137 = vpack.c.b16 %v115, %v113
    %v138 = vpack.c.b16 %v116, %v114
    %v139 = vpack.c.b16 %v119, %v117
    %v140 = vpack.c.b16 %v120, %v118
    %v141 = vpack.c.b16 %v123, %v121
    %v142 = vpack.c.b16 %v124, %v122
    %v143 = vpack.c.b16 %v127, %v125
    %v144 = vpack.c.b16 %v128, %v126
    %161 = vmatprep.subr.bf16.mxu0 %v130
    %162 = vmatpush1.bf16.msra.mxu0 %v129
    %163 = vmatprep.subr.bf16.mxu0 %v132
    %164 = vmatpush1.bf16.msra.mxu0 %v131
    %165 = vmatprep.subr.bf16.mxu0 %v134
    %166 = vmatpush1.bf16.msra.mxu0 %v133
    %167 = vmatprep.subr.bf16.mxu0 %v136
    %168 = vmatpush1.bf16.msra.mxu0 %v135
    %169 = vmatprep.subr.bf16.mxu0 %v138
    %170 = vmatpush1.bf16.msra.mxu0 %v137
    %171 = vmatprep.subr.bf16.mxu0 %v140
    %172 = vmatpush1.bf16.msra.mxu0 %v139
    %173 = vmatprep.subr.bf16.mxu0 %v142
    %174 = vmatpush1.bf16.msra.mxu0 %v141
    %175 = vmatprep.subr.bf16.mxu0 %v144
    %176 = vmatpush1.bf16.msra.mxu0 %v143
    %177 = vmatprep.subr.bf16.mxu0 0
    %178 = vmatpush1.bf16.msra.mxu0 0
    %179 = vmatprep.subr.bf16.mxu0 0
    %180 = vmatpush1.bf16.msra.mxu0 0
    %181 = vmatprep.subr.bf16.mxu0 0
    %182 = vmatpush1.bf16.msra.mxu0 0
    %183 = vmatprep.subr.bf16.mxu0 0
    %184 = vmatpush1.bf16.msra.mxu0 0
    %185 = vmatprep.subr.bf16.mxu0 0
    %186 = vmatpush1.bf16.msra.mxu0 0
    %187 = vmatprep.subr.bf16.mxu0 0
    %188 = vmatpush1.bf16.msra.mxu0 0
    %189 = vmatprep.subr.bf16.mxu0 0
    %190 = vmatpush1.bf16.msra.mxu0 0
    %191 = vmatprep.subr.bf16.mxu0 0
    %192 = vmatpush1.bf16.msra.mxu0 0
    %193 = vmatprep.mubr.bf16.mxu0 0
    %194 = vmatmul.mubr.bf16.gmra.mrb[0].mxu0 %v64
    %v195 = vpop.f32.mrb[0].mxu0
    %v196 = vadd.f32 0.0, %v195
    %v197 = vpop.f32.mrb[0].mxu0
    %v198 = vadd.f32 0.0, %v197
    %v199 = vpop.f32.mrb[0].mxu0
    %v200 = vpop.f32.mrb[0].mxu0
    %201 = vdwg.mxu0
    %v202 = vrot.slane %v196, 4
    %v203 = vadd.f32 %v196, %v202
    %v204 = vrot.slane %v203, 2
    %v205 = vadd.f32 %v203, %v204
    %v206 = vrot.slane %v205, 1
    %v207 = vadd.f32 %v205, %v206
    %v208 = vrot.slane %v198, 4
    %v209 = vadd.f32 %v198, %v208
    %v210 = vrot.slane %v209, 2
    %v211 = vadd.f32 %v209, %v210
    %v212 = vrot.slane %v211, 1
    %v213 = vadd.f32 %v211, %v212
    %v214 = vrcp.pop 8.0
    %v215 = vmul.f32 %v207, %v214
    %v216 = vmul.f32 %v213, %v214
    %v217 = vsub.f32 %v196, %v215
    %v218 = vsub.f32 %v198, %v216
    %v219 = vmul.f32 %v217, %v217
    %v220 = vmul.f32 %v218, %v218
    %v221 = vrot.slane %v219, 4
    %v222 = vadd.f32 %v219, %v221
    %v223 = vrot.slane %v222, 2
    %v224 = vadd.f32 %v222, %v223
    %v225 = vrot.slane %v224, 1
    %v226 = vadd.f32 %v224, %v225
    %v227 = vrot.slane %v220, 4
    %v228 = vadd.f32 %v220, %v227
    %v229 = vrot.slane %v228, 2
    %v230 = vadd.f32 %v228, %v229
    %v231 = vrot.slane %v230, 1
    %v232 = vadd.f32 %v230, %v231
    %v233 = vmul.f32 %v226, %v214
    %v234 = vmul.f32 %v232, %v214
    %v235 = vld [vmem:[%s2] sm:$0x3]
    %v236 = vadd.f32 %v233, 1e-05
    %v237 = vadd.f32 %v234, 1e-05
    %v238 = vrsqrt.pop %v236
    %v239 = vrsqrt.pop %v237
    %v242 = vcombine.low %v238, %v239
    %v244 = vunpack.c.l.s4 1966171168
    %v245 = vunpack.c.0.s8 %v244
    %v246 = vlaneseq
    %v247 = vshrl.u32 %v246, 7
    %v248 = vsub.s32 %v245, %v247
    %v249 = vrot.slane %v242, %v248
    %v251 = vunpack.c.l.s4 1966171168
    %v252 = vunpack.c.0.s8 %v251
    %v253 = vlaneseq
    %v254 = vshrl.u32 %v253, 7
    %v255 = vsub.s32 %v252, %v254
    %v256 = vrot.slane %v249, %v255
    %v258 = vmul.f32 %v235, %v256
    %v259 = vld [vmem:[%s3] sm:$0x3]
    %v261 = vlaneseq
    %v262 = vshrl.u32 %v261, 7
    %v263 = vsub.s32 0, %v262
    %v264 = vrot.slane %v258, %v263
    %v265 = vlaneseq
    %v266 = vshrl.u32 %v265, 7
    %v267 = vsub.s32 1, %v266
    %v268 = vrot.slane %v258, %v267
    %v271 = vmul.f32 %v215, %v264
    %v272 = vmul.f32 %v216, %v268
    %v275 = vcombine.low %v271, %v272
    %v277 = vunpack.c.l.s4 1966171168
    %v278 = vunpack.c.0.s8 %v277
    %v279 = vlaneseq
    %v280 = vshrl.u32 %v279, 7
    %v281 = vsub.s32 %v278, %v280
    %v282 = vrot.slane %v275, %v281
    %v284 = vunpack.c.l.s4 1966171168
    %v285 = vunpack.c.0.s8 %v284
    %v286 = vlaneseq
    %v287 = vshrl.u32 %v286, 7
    %v288 = vsub.s32 %v285, %v287
    %v289 = vrot.slane %v282, %v288
    %v291 = vsub.f32 %v259, %v289
    %v292 = vmul.f32 %v196, %v264
    %v293 = vmul.f32 %v198, %v268
    %v295 = vlaneseq
    %v296 = vshrl.u32 %v295, 7
    %v297 = vsub.s32 0, %v296
    %v298 = vrot.slane %v291, %v297
    %v299 = vlaneseq
    %v300 = vshrl.u32 %v299, 7
    %v301 = vsub.s32 1, %v300
    %v302 = vrot.slane %v291, %v301
    %v305 = vadd.f32 %v292, %v298
    %v306 = vadd.f32 %v293, %v302
    %v307 = vtanh.pop %v305
    %v308 = vtanh.pop %v306
    %v309 = vpack.c.bf16 %v307, %v307
    %v310 = vpack.c.bf16 %v308, %v308
    %v311 = vld [vmem:[#allocation7] sm:$0xf]
    %v312 = vld [vmem:[#allocation7 + $0x4] sm:$0xf]
    %v313 = vld [vmem:[#allocation7 + $0x8] sm:$0xf]
    %v314 = vld [vmem:[#allocation7 + $0xc] sm:$0xf]
    %v315 = vld [vmem:[#allocation7 + $0x10] sm:$0xf]
    %v316 = vld [vmem:[#allocation7 + $0x14] sm:$0xf]
    %v317 = vld [vmem:[#allocation7 + $0x18] sm:$0xf]
    %v318 = vld [vmem:[#allocation7 + $0x1c] sm:$0xf]
    %v319 = vld [vmem:[#allocation7 + $0x20] sm:$0xf]
    %v320 = vld [vmem:[#allocation7 + $0x24] sm:$0xf]
    %v321 = vld [vmem:[#allocation7 + $0x28] sm:$0xf]
    %v322 = vld [vmem:[#allocation7 + $0x2c] sm:$0xf]
    %v323 = vld [vmem:[#allocation7 + $0x30] sm:$0xf]
    %v324 = vld [vmem:[#allocation7 + $0x34] sm:$0xf]
    %v325 = vld [vmem:[#allocation7 + $0x38] sm:$0xf]
    %v326 = vld [vmem:[#allocation7 + $0x3c] sm:$0xf]
    %v327 = vld [vmem:[#allocation7 + $0x40] sm:$0xf]
    %v328 = vld [vmem:[#allocation7 + $0x44] sm:$0xf]
    %v329 = vld [vmem:[#allocation7 + $0x48] sm:$0xf]
    %v330 = vld [vmem:[#allocation7 + $0x4c] sm:$0xf]
    %v331 = vld [vmem:[#allocation7 + $0x50] sm:$0xf]
    %v332 = vld [vmem:[#allocation7 + $0x54] sm:$0xf]
    %v333 = vld [vmem:[#allocation7 + $0x58] sm:$0xf]
    %v334 = vld [vmem:[#allocation7 + $0x5c] sm:$0xf]
    %v335 = vld [vmem:[#allocation7 + $0x60] sm:$0xf]
    %v336 = vld [vmem:[#allocation7 + $0x64] sm:$0xf]
    %v337 = vld [vmem:[#allocation7 + $0x68] sm:$0xf]
    %v338 = vld [vmem:[#allocation7 + $0x6c] sm:$0xf]
    %v339 = vld [vmem:[#allocation7 + $0x70] sm:$0xf]
    %v340 = vld [vmem:[#allocation7 + $0x74] sm:$0xf]
    %v341 = vld [vmem:[#allocation7 + $0x78] sm:$0xf]
    %v342 = vld [vmem:[#allocation7 + $0x7c] sm:$0xf]
    %v343 = vld [vmem:[%s5] sm:$0x1]
    %v345 = vlaneseq
    %v346 = vshrl.u32 %v345, 7
    %v347 = vsub.s32 0, %v346
    %v348 = vrot.slane %v343, %v347
    %v382 = vunpack.c.l.b16 %v311
    %v383 = vunpack.c.l.b16 %v312
    %v384 = vunpack.c.l.b16 %v313
    %v385 = vunpack.c.l.b16 %v314
    %v386 = vunpack.c.l.b16 %v315
    %v387 = vunpack.c.l.b16 %v316
    %v388 = vunpack.c.l.b16 %v317
    %v389 = vunpack.c.l.b16 %v318
    %v390 = vunpack.c.l.b16 %v319
    %v391 = vunpack.c.l.b16 %v320
    %v392 = vunpack.c.l.b16 %v321
    %v393 = vunpack.c.l.b16 %v322
    %v394 = vunpack.c.l.b16 %v323
    %v395 = vunpack.c.l.b16 %v324
    %v396 = vunpack.c.l.b16 %v325
    %v397 = vunpack.c.l.b16 %v326
    %v398 = vunpack.c.l.b16 %v327
    %v399 = vunpack.c.l.b16 %v328
    %v400 = vunpack.c.l.b16 %v329
    %v401 = vunpack.c.l.b16 %v330
    %v402 = vunpack.c.l.b16 %v331
    %v403 = vunpack.c.l.b16 %v332
    %v404 = vunpack.c.l.b16 %v333
    %v405 = vunpack.c.l.b16 %v334
    %v406 = vunpack.c.l.b16 %v335
    %v407 = vunpack.c.l.b16 %v336
    %v408 = vunpack.c.l.b16 %v337
    %v409 = vunpack.c.l.b16 %v338
    %v410 = vunpack.c.l.b16 %v339
    %v411 = vunpack.c.l.b16 %v340
    %v412 = vunpack.c.l.b16 %v341
    %v413 = vunpack.c.l.b16 %v342
    %v414 = vpack.c.b16 %v383, %v382
    %v415 = vpack.c.b16 %v385, %v384
    %v416 = vpack.c.b16 %v387, %v386
    %v417 = vpack.c.b16 %v389, %v388
    %v418 = vpack.c.b16 %v391, %v390
    %v419 = vpack.c.b16 %v393, %v392
    %v420 = vpack.c.b16 %v395, %v394
    %v421 = vpack.c.b16 %v397, %v396
    %v422 = vpack.c.b16 %v399, %v398
    %v423 = vpack.c.b16 %v401, %v400
    %v424 = vpack.c.b16 %v403, %v402
    %v425 = vpack.c.b16 %v405, %v404
    %v426 = vpack.c.b16 %v407, %v406
    %v427 = vpack.c.b16 %v409, %v408
    %v428 = vpack.c.b16 %v411, %v410
    %v429 = vpack.c.b16 %v413, %v412
    %446 = vmatprep.subr.bf16.mxu0 0
    %447 = vmatpush1.bf16.msra.mxu0 %v414
    %448 = vmatprep.subr.bf16.mxu0 0
    %449 = vmatpush1.bf16.msra.mxu0 %v415
    %450 = vmatprep.subr.bf16.mxu0 0
    %451 = vmatpush1.bf16.msra.mxu0 %v416
    %452 = vmatprep.subr.bf16.mxu0 0
    %453 = vmatpush1.bf16.msra.mxu0 %v417
    %454 = vmatprep.subr.bf16.mxu0 0
    %455 = vmatpush1.bf16.msra.mxu0 %v418
    %456 = vmatprep.subr.bf16.mxu0 0
    %457 = vmatpush1.bf16.msra.mxu0 %v419
    %458 = vmatprep.subr.bf16.mxu0 0
    %459 = vmatpush1.bf16.msra.mxu0 %v420
    %460 = vmatprep.subr.bf16.mxu0 0
    %461 = vmatpush1.bf16.msra.mxu0 %v421
    %462 = vmatprep.subr.bf16.mxu0 0
    %463 = vmatpush1.bf16.msra.mxu0 %v422
    %464 = vmatprep.subr.bf16.mxu0 0
    %465 = vmatpush1.bf16.msra.mxu0 %v423
    %466 = vmatprep.subr.bf16.mxu0 0
    %467 = vmatpush1.bf16.msra.mxu0 %v424
    %468 = vmatprep.subr.bf16.mxu0 0
    %469 = vmatpush1.bf16.msra.mxu0 %v425
    %470 = vmatprep.subr.bf16.mxu0 0
    %471 = vmatpush1.bf16.msra.mxu0 %v426
    %472 = vmatprep.subr.bf16.mxu0 0
    %473 = vmatpush1.bf16.msra.mxu0 %v427
    %474 = vmatprep.subr.bf16.mxu0 0
    %475 = vmatpush1.bf16.msra.mxu0 %v428
    %476 = vmatprep.subr.bf16.mxu0 0
    %477 = vmatpush1.bf16.msra.mxu0 %v429
    %478 = vmatprep.mubr.bf16.mxu0 %v310
    %479 = vmatmul.mubr.bf16.gmra.mrb[0].mxu0 %v309
    %v480 = vpop.f32.mrb[0].mxu0
    %v481 = vadd.f32 %v348, %v480
    %v482 = vpop.f32.mrb[0].mxu0
    %v483 = vpop.f32.mrb[0].mxu0
    %v484 = vpop.f32.mrb[0].mxu0
    %485 = vdwg.mxu0
    %v486 = vpack.c.bf16 %v481, %v481
    %487 = vst [vmem:[#allocation8] sm:$0xf] %v486
    // Predicated region
    $region38: #{tpu_custom_call.1} parent=1 // pred_check
      _
    $region39: #{tpu_custom_call.1} parent=1 // pred_check_branch
      %489 = sbr.rel (0) target = $region41
    $region40: #{tpu_custom_call.1} parent=1 // pred_region
      %s491 = ssub.s32 64, 64
      %492 = vsyncadd [#allocation4], %s491
      %s494 = sshll.u32 [#allocation8], 4
      %s495 = int_to_ptr.vmem [resolvable:$true] %s494
      %497 = dma.vmem_to_hbm [thread:$0]  %s495, 64, %s6, [#allocation4]
    $region41: #{tpu_custom_call.1} parent=1 // pred_fallthru
      _
    // Predicated region
    $region42: #{tpu_custom_call.1} parent=1 // pred_check
      _
    $region43: #{tpu_custom_call.1} parent=1 // pred_check_branch
      %499 = sbr.rel (0) target = $region45
    $region44: #{tpu_custom_call.1} parent=1 // pred_region
      %500 = dma.done [#allocation4], 64
    $region45: #{tpu_custom_call.1} parent=1 // pred_fallthru
      _
    %501 = vsyncpa [#allocation3], 1
    %502 = vsyncpa [#allocation6], 1
    %503 = vsyncpa [#allocation4], 1

</llo_original>
